<compile_context>
chip_gen: v7x
topology: tpu7x:2x2x1
jax: 0.10.0
libtpu: 0.0.40
codegen_flags: <defaults>
</compile_context>

<pallas_src>
import math

import jax
import jax.numpy as jnp
from jax.experimental import pallas as pl
from jax.experimental.pallas import tpu as pltpu


def _err_to_noise_kernel(params_ref, x_ref, o_ref, out_ref):
    # params (SMEM, f32[9]): [wa00, wa01, wa10, wa11, ba0, ba1, wb0, wb1, bb0]
    wa00 = params_ref[0]
    wa01 = params_ref[1]
    wa10 = params_ref[2]
    wa11 = params_ref[3]
    ba0 = params_ref[4]
    ba1 = params_ref[5]
    wb0 = params_ref[6]
    wb1 = params_ref[7]
    bb0 = params_ref[8]

    # Cast in-kernel: slabs stream in the caller's dtype (fewer HBM bytes for
    # bf16 callers); math runs in f32 on the VPU, tanh on the EUP.
    x = x_ref[...].astype(jnp.float32)
    o = o_ref[...].astype(jnp.float32)

    # y = concat([x, out], -1); h = relu(a(y))   (Linear(2,2) expanded, VPU)
    h0 = jnp.maximum(x * wa00 + o * wa01 + ba0, 0.0)
    h1 = jnp.maximum(x * wa10 + o * wa11 + ba1, 0.0)

    # z = tanh(b(h))                             (Linear(2,1) expanded, EUP tanh)
    z = jnp.tanh(h0 * wb0 + h1 * wb1 + bb0)
    out_ref[...] = z.astype(out_ref.dtype)


def _choose_cols(n):
    """Lane-dense width: minimize padding waste; go wider only when the extra
    waste is negligible (<~1% of n)."""
    best_cols = 128
    best_waste = (-n) % 128
    for cols in (256, 512, 1024):
        waste = (-n) % cols
        if waste - best_waste <= max(n // 100, 0):
            best_cols, best_waste = cols, waste
    return best_cols


def _choose_block_rows(rows, sublane, max_block_elems, cols):
    """Row-tile size: sublane-aligned, bounded by a VMEM element budget, and
    capped so the grid has >= 4 tiles when rows allows (v7x TC sharding)."""
    cap = max(sublane, (max_block_elems // cols) // sublane * sublane)
    desired = min(cap, pl.cdiv(rows, 4))
    block_rows = max(sublane, desired // sublane * sublane)
    if block_rows >= rows:
        block_rows = rows  # single full-extent block (legal even if unaligned)
    return block_rows


def err_to_noise(x, out, wa, ba, wb, bb, *, max_block_elems=1 << 20,
                 donate_out=False):
    """x, out: (..., 1) arrays.  Returns (..., 1) in the promoted input dtype.

    wa: (2, 2), ba: (2,), wb: (1, 2), bb: (1,)  (torch.nn.Linear convention:
    y = x @ W.T + b).

    donate_out=True aliases the kernel output with the padded/cast `out` slab.
    This only saves the output allocation (HBM traffic is unchanged) and is
    applied only when the wrapper demonstrably made a fresh buffer, so the
    caller's `out` array is never clobbered.
    """
    assert x.shape == out.shape and x.shape[-1] == 1

    lead_shape = x.shape[:-1]
    n = math.prod(lead_shape) if lead_shape else 1

    slab_dtype = jnp.result_type(x.dtype, out.dtype)
    itemsize = jnp.dtype(slab_dtype).itemsize
    sublane = 8 * max(1, 4 // itemsize)          # f32: 8, bf16: 16, int8: 32

    cols = _choose_cols(n)
    rows = pl.cdiv(n, cols)                      # NOT rounded to block multiple
    block_rows = _choose_block_rows(rows, sublane, max_block_elems, cols)
    n_pad = rows * cols

    def to_slab(a):
        flat = a.reshape(-1)
        if flat.dtype != slab_dtype:
            flat = flat.astype(slab_dtype)
        if n_pad != n:
            flat = jnp.pad(flat, (0, n_pad - n))
        return flat.reshape(rows, cols)

    x2 = to_slab(x)
    o2 = to_slab(out)

    # Packed scalar params for SMEM.  (Under jit with static weights this
    # folds to a constant; for repeated calls, pack once outside the hot path.)
    params = jnp.concatenate(
        [wa.reshape(-1), ba.reshape(-1), wb.reshape(-1), bb.reshape(-1)]
    ).astype(jnp.float32)  # f32[9]

    grid = (pl.cdiv(rows, block_rows),)          # partial last block is fine
    tile_spec = pl.BlockSpec((block_rows, cols), lambda i: (i, 0))

    extra = {}
    out_is_fresh = (n_pad != n) or (out.dtype != slab_dtype)
    if donate_out and out_is_fresh:
        extra["input_output_aliases"] = {2: 0}   # reuse the fresh o2 buffer

    z2 = pl.pallas_call(
        _err_to_noise_kernel,
        out_shape=jax.ShapeDtypeStruct((rows, cols), slab_dtype),
        grid=grid,
        in_specs=[
            pl.BlockSpec(memory_space=pltpu.SMEM),   # params (9 scalars)
            tile_spec,                               # x slab
            tile_spec,                               # out slab
        ],
        out_specs=tile_spec,
        compiler_params=pltpu.CompilerParams(
            dimension_semantics=("parallel",),       # shard row tiles across v7x TCs
            vmem_limit_bytes=48 * 1024 * 1024,       # explicit: safe on v5e/v6e/v7x
        ),
        **extra,
    )(params, x2, o2)

    z = z2.reshape(-1)
    if n_pad != n:
        z = z[:n]
    return z.reshape(lead_shape + (1,))


def _reference(x, out, wa, ba, wb, bb):
    y = jnp.concatenate([x, out], axis=-1)
    h = jax.nn.relu(y @ wa.T + ba)
    return jnp.tanh(h @ wb.T + bb)


if __name__ == "__main__":
    key = jax.random.PRNGKey(0)
    k_x, k_o, k_wa, k_ba, k_wb, k_bb = jax.random.split(key, 6)

    # Small shapes consistent with the module: (..., 1) inputs.
    # 2*4*200 = 1600 elements -> exercises cols=128 + partial-last-block path.
    x = jax.random.normal(k_x, (2, 4, 200, 1), dtype=jnp.float32)
    out = jax.random.normal(k_o, (2, 4, 200, 1), dtype=jnp.float32)

    # Deterministic parameter init mimicking torch.nn.Linear (U[-1/sqrt(fan_in), +]).
    bound = 1.0 / jnp.sqrt(2.0)
    wa = jax.random.uniform(k_wa, (2, 2), minval=-bound, maxval=bound)
    ba = jax.random.uniform(k_ba, (2,), minval=-bound, maxval=bound)
    wb = jax.random.uniform(k_wb, (1, 2), minval=-bound, maxval=bound)
    bb = jax.random.uniform(k_bb, (1,), minval=-bound, maxval=bound)

    z_ref = _reference(x, out, wa, ba, wb, bb)

    # 1) Default path: waste-minimizing cols, partial last block, grid of 2.
    z = jax.block_until_ready(err_to_noise(x, out, wa, ba, wb, bb))
    assert z.shape == z_ref.shape == (2, 4, 200, 1)
    assert jnp.allclose(z, z_ref, atol=1e-5, rtol=1e-5)

    # 2) Forced tiny blocks (multi-tile grid) + aliasing onto the fresh padded slab.
    z2 = jax.block_until_ready(
        err_to_noise(x, out, wa, ba, wb, bb,
                     max_block_elems=1024, donate_out=True))
    assert jnp.allclose(z2, z_ref, atol=1e-5, rtol=1e-5)

    # 3) bf16 caller: slabs stay bf16 in HBM, cast to f32 inside the kernel,
    #    output emitted in bf16.
    xb = x.astype(jnp.bfloat16)
    ob = out.astype(jnp.bfloat16)
    zb = jax.block_until_ready(err_to_noise(xb, ob, wa, ba, wb, bb))
    zb_ref = _reference(xb.astype(jnp.float32), ob.astype(jnp.float32),
                        wa, ba, wb, bb)
    assert zb.dtype == jnp.bfloat16
    assert jnp.allclose(zb.astype(jnp.float32), zb_ref, atol=2e-2, rtol=2e-2)

    print("KERNEL_OK")
</pallas_src>

<mosaic_0001>
module attributes {stable_mosaic.version = 11 : i64} {
  func.func @_err_to_noise_kernel(%arg0: i32, %arg1: memref<9xf32, #tpu.memory_space<smem>>, %arg2: memref<8x128xf32, #tpu.memory_space<vmem>>, %arg3: memref<8x128xf32, #tpu.memory_space<vmem>>, %arg4: memref<8x128xf32, #tpu.memory_space<vmem>>) attributes {dimension_semantics = [#tpu.dimension_semantics<parallel>], iteration_bounds = array<i64: 2>, scalar_prefetch = 0 : i64, scratch_operands = 0 : i64, tpu.core_type = #tpu.core_type<tc>, window_params = [{transform_indices = @transform_0, window_bounds = array<i64: 9>}, {transform_indices = @transform_1, window_bounds = array<i64: 8, 128>}, {transform_indices = @transform_2, window_bounds = array<i64: 8, 128>}, {transform_indices = @transform_3, window_bounds = array<i64: 8, 128>}]} {
    %c0 = arith.constant 0 : index
    %0 = memref.load %arg1[%c0] : memref<9xf32, #tpu.memory_space<smem>>
    %c1 = arith.constant 1 : index
    %1 = memref.load %arg1[%c1] : memref<9xf32, #tpu.memory_space<smem>>
    %c2 = arith.constant 2 : index
    %2 = memref.load %arg1[%c2] : memref<9xf32, #tpu.memory_space<smem>>
    %c3 = arith.constant 3 : index
    %3 = memref.load %arg1[%c3] : memref<9xf32, #tpu.memory_space<smem>>
    %c4 = arith.constant 4 : index
    %4 = memref.load %arg1[%c4] : memref<9xf32, #tpu.memory_space<smem>>
    %c5 = arith.constant 5 : index
    %5 = memref.load %arg1[%c5] : memref<9xf32, #tpu.memory_space<smem>>
    %c6 = arith.constant 6 : index
    %6 = memref.load %arg1[%c6] : memref<9xf32, #tpu.memory_space<smem>>
    %c7 = arith.constant 7 : index
    %7 = memref.load %arg1[%c7] : memref<9xf32, #tpu.memory_space<smem>>
    %c8 = arith.constant 8 : index
    %8 = memref.load %arg1[%c8] : memref<9xf32, #tpu.memory_space<smem>>
    %c0_0 = arith.constant 0 : index
    %c0_1 = arith.constant 0 : index
    %9 = vector.load %arg2[%c0_0, %c0_1] : memref<8x128xf32, #tpu.memory_space<vmem>>, vector<8x128xf32>
    %c0_2 = arith.constant 0 : index
    %c0_3 = arith.constant 0 : index
    %10 = vector.load %arg3[%c0_2, %c0_3] : memref<8x128xf32, #tpu.memory_space<vmem>>, vector<8x128xf32>
    %11 = vector.broadcast %0 : f32 to vector<8x128xf32>
    %12 = arith.mulf %9, %11 : vector<8x128xf32>
    %13 = vector.broadcast %1 : f32 to vector<8x128xf32>
    %14 = arith.mulf %10, %13 : vector<8x128xf32>
    %15 = arith.addf %12, %14 : vector<8x128xf32>
    %16 = vector.broadcast %4 : f32 to vector<8x128xf32>
    %17 = arith.addf %15, %16 : vector<8x128xf32>
    %cst = arith.constant 0.000000e+00 : f32
    %18 = vector.broadcast %cst : f32 to vector<8x128xf32>
    %19 = arith.maximumf %17, %18 : vector<8x128xf32>
    %20 = vector.broadcast %2 : f32 to vector<8x128xf32>
    %21 = arith.mulf %9, %20 : vector<8x128xf32>
    %22 = vector.broadcast %3 : f32 to vector<8x128xf32>
    %23 = arith.mulf %10, %22 : vector<8x128xf32>
    %24 = arith.addf %21, %23 : vector<8x128xf32>
    %25 = vector.broadcast %5 : f32 to vector<8x128xf32>
    %26 = arith.addf %24, %25 : vector<8x128xf32>
    %cst_4 = arith.constant 0.000000e+00 : f32
    %27 = vector.broadcast %cst_4 : f32 to vector<8x128xf32>
    %28 = arith.maximumf %26, %27 : vector<8x128xf32>
    %29 = vector.broadcast %6 : f32 to vector<8x128xf32>
    %30 = arith.mulf %19, %29 : vector<8x128xf32>
    %31 = vector.broadcast %7 : f32 to vector<8x128xf32>
    %32 = arith.mulf %28, %31 : vector<8x128xf32>
    %33 = arith.addf %30, %32 : vector<8x128xf32>
    %34 = vector.broadcast %8 : f32 to vector<8x128xf32>
    %35 = arith.addf %33, %34 : vector<8x128xf32>
    %36 = math.tanh %35 : vector<8x128xf32>
    %c0_5 = arith.constant 0 : index
    %c0_6 = arith.constant 0 : index
    %37 = vector.load %arg4[%c0_5, %c0_6] : memref<8x128xf32, #tpu.memory_space<vmem>>, vector<8x128xf32>
    tpu.vector_store %arg4[%c0_5, %c0_6], %36 {strides = array<i32>} : memref<8x128xf32, #tpu.memory_space<vmem>>, vector<8x128xf32>,
    return
  }
  func.func @transform_0(%arg0: i32) -> i32 {
    %c0_i32 = arith.constant 0 : i32
    %c0_i32_0 = arith.constant 0 : i32
    return %c0_i32 : i32
  }
  func.func @transform_1(%arg0: i32) -> (i32, i32) {
    %c0_i32 = arith.constant 0 : i32
    %c0_i32_0 = arith.constant 0 : i32
    return %arg0, %c0_i32 : i32, i32
  }
  func.func @transform_2(%arg0: i32) -> (i32, i32) {
    %c0_i32 = arith.constant 0 : i32
    %c0_i32_0 = arith.constant 0 : i32
    return %arg0, %c0_i32 : i32, i32
  }
  func.func @transform_3(%arg0: i32) -> (i32, i32) {
    %c0_i32 = arith.constant 0 : i32
    %c0_i32_0 = arith.constant 0 : i32
    return %arg0, %c0_i32 : i32, i32
  }
}

</mosaic_0001>

<llo_original>
// kernel: tpu_custom_call.1
$region0: #{tpu_custom_call.1}
  #allocation0 [shape = 'u32[]', space=smem, size = 0x4, offset = 0x4, fixed_abs, tag = 'smem constant byte address 0x4 - core index']
  #allocation1 [shape = 'u32[144,128]{1,0:T(1,128)}', space=vmem, size = 0x12000, scoped, tag = 'internal scratch']
  %s0 = inlined_call_operand.hbm [shape: f32[9], index: 0, kind: input, shape index: {}]
  %s1 = inlined_call_operand.hbm [shape: f32[13,128], index: 1, kind: input, shape index: {}]
  %s2 = inlined_call_operand.hbm [shape: f32[13,128], index: 2, kind: input, shape index: {}]
  %s3 = inlined_call_operand.hbm [shape: f32[13,128], index: 3, kind: output, shape index: {}]
  %s4 = sld [smem:[#allocation0]]
  $region57: #{tpu_custom_call.1} parent=0
    _
  %s6 = ssub.s32 1, %s4
  %s7 = scalar_select 0, %s6, %s4
  $region1: #{tpu_custom_call.1} parent=0
    #allocation2 [shape = 'u8[512]{0}', space=smem, size = 0x200, scoped, tag = 'input window, operand 0, single buffered']
    #allocation3 [shape = 's32[2]{0}', space=sflag, size = 0x8, scoped, tag = 'scoped memory for tpu_custom_call.1']
    #allocation4 [shape = 's32[2]{0}', space=sflag, size = 0x8, scoped, tag = 'scoped memory for tpu_custom_call.1']
    #allocation5 [shape = 's32[2]{0}', space=sflag, size = 0x8, scoped, tag = 'scoped memory for tpu_custom_call.1']
    #allocation6 [shape = 'u8[8192]{0}', space=vmem, size = 0x2000, scoped, tag = 'input window, operand 1']
    #allocation7 [shape = 'u8[8192]{0}', space=vmem, size = 0x2000, scoped, tag = 'input window, operand 2']
    #allocation8 [shape = 's32[2]{0}', space=sflag, size = 0x8, scoped, tag = 'scoped memory for tpu_custom_call.1']
    #allocation9 [shape = 'u8[8192]{0}', space=vmem, size = 0x2000, scoped, tag = 'output window, operand 0']
    %8 = vsyncpa [#allocation5], 0
    %9 = vsyncpa [#allocation3], 0
    %s10 = scalar_lea.sflag [#allocation3], 1
    %11 = vsyncpa %s10, 0
    %12 = vsyncpa [#allocation8], 0
    %s13 = scalar_lea.sflag [#allocation8], 1
    %14 = vsyncpa %s13, 0
    %15 = vsyncpa [#allocation4], 0
    %s16 = scalar_lea.sflag [#allocation4], 1
    %17 = vsyncpa %s16, 0
    loop: start=0, step=1, limit=4
    $region2: #{tpu_custom_call.1} parent=1 // loop_pre_header
      _
    $region3: #{tpu_custom_call.1} parent=1 // loop_header
      %s19 = sphi 0, %s23
      %p20 = scmp.ge.s32.totalorder %s19, 4
      %s27 = sphi 0, %s27
      %s29 = sphi 0, %s27
      %s30 = sphi 0, %s29
      %s44 = sphi 0, %s30
      %s50 = sphi 0, %s52
      %s53 = sphi 0, %s50
      %s54 = sphi 0, %s53
      %s70 = sphi 0, %s54
      %s76 = sphi 0, %s78
      %s79 = sphi 0, %s76
      %s80 = sphi 0, %s79
      %s96 = sphi 0, %s80
      %s102 = sphi 0, %s104
      %s105 = sphi 0, %s102
      %s106 = sphi 0, %s105
      %s122 = sphi 0, %s106
    $region4: #{tpu_custom_call.1} parent=1 // loop_header_branch
      %22 = sbr.rel (%p20) target = $region8
    $region5: #{tpu_custom_call.1} parent=1 // loop_body
      %s24 = ssub.s32 %s19, 1
      %s25 = ssub.s32 %s19, 2
      %s26 = sadd.s32 %s19, 1
      %s28 = sadd.s32 %s27, 1
      %p31 = scmp.eq.s32.totalorder %s19, 1
      %p32 = scmp.ne.s32.totalorder %s27, %s29
      %p33 = scmp.eq.s32.totalorder %s19, 0
      %p34 = por %p32, %p33
      %p35 = scmp.ne.s32.totalorder %s27, %s29
      %p36 = scmp.eq.s32.totalorder %s24, 1
      %p37 = por %p35, %p36
      %p38 = scmp.ne.s32.totalorder %s29, %s30
      %p39 = scmp.eq.s32.totalorder %s24, 0
      %p40 = por %p38, %p39
      %p41 = scmp.ne.s32.totalorder %s29, %s30
      %p42 = scmp.eq.s32.totalorder %s25, 1
      %p43 = por %p41, %p42
      %p45 = scmp.ne.s32.totalorder %s30, %s44
      %p46 = scmp.eq.s32.totalorder %s25, 0
      %p47 = por %p45, %p46
      %s48 = ssub.s32 %s19, %s26
      %p49 = scmp.eq.s32.totalorder %s48, 0
      %s51 = sadd.s32 %s50, 1
      %s52 = scalar_select %p49, %s50, %s51
      %p55 = pneg %p49
      %p56 = scmp.eq.s32.totalorder %s19, 1
      %p57 = por %p55, %p56
      %p58 = scmp.ne.s32.totalorder %s50, %s53
      %p59 = scmp.eq.s32.totalorder %s19, 0
      %p60 = por %p58, %p59
      %p61 = scmp.ne.s32.totalorder %s50, %s53
      %p62 = scmp.eq.s32.totalorder %s24, 1
      %p63 = por %p61, %p62
      %p64 = scmp.ne.s32.totalorder %s53, %s54
      %p65 = scmp.eq.s32.totalorder %s24, 0
      %p66 = por %p64, %p65
      %p67 = scmp.ne.s32.totalorder %s53, %s54
      %p68 = scmp.eq.s32.totalorder %s25, 1
      %p69 = por %p67, %p68
      %p71 = scmp.ne.s32.totalorder %s54, %s70
      %p72 = scmp.eq.s32.totalorder %s25, 0
      %p73 = por %p71, %p72
      %s74 = ssub.s32 %s19, %s26
      %p75 = scmp.eq.s32.totalorder %s74, 0
      %s77 = sadd.s32 %s76, 1
      %s78 = scalar_select %p75, %s76, %s77
      %p81 = pneg %p75
      %p82 = scmp.eq.s32.totalorder %s19, 1
      %p83 = por %p81, %p82
      %p84 = scmp.ne.s32.totalorder %s76, %s79
      %p85 = scmp.eq.s32.totalorder %s19, 0
      %p86 = por %p84, %p85
      %p87 = scmp.ne.s32.totalorder %s76, %s79
      %p88 = scmp.eq.s32.totalorder %s24, 1
      %p89 = por %p87, %p88
      %p90 = scmp.ne.s32.totalorder %s79, %s80
      %p91 = scmp.eq.s32.totalorder %s24, 0
      %p92 = por %p90, %p91
      %p93 = scmp.ne.s32.totalorder %s79, %s80
      %p94 = scmp.eq.s32.totalorder %s25, 1
      %p95 = por %p93, %p94
      %p97 = scmp.ne.s32.totalorder %s80, %s96
      %p98 = scmp.eq.s32.totalorder %s25, 0
      %p99 = por %p97, %p98
      %s100 = ssub.s32 %s19, %s26
      %p101 = scmp.eq.s32.totalorder %s100, 0
      %s103 = sadd.s32 %s102, 1
      %s104 = scalar_select %p101, %s102, %s103
      %p107 = pneg %p101
      %p108 = scmp.eq.s32.totalorder %s19, 1
      %p109 = por %p107, %p108
      %p110 = scmp.ne.s32.totalorder %s102, %s105
      %p111 = scmp.eq.s32.totalorder %s19, 0
      %p112 = por %p110, %p111
      %p113 = scmp.ne.s32.totalorder %s102, %s105
      %p114 = scmp.eq.s32.totalorder %s24, 1
      %p115 = por %p113, %p114
      %p116 = scmp.ne.s32.totalorder %s105, %s106
      %p117 = scmp.eq.s32.totalorder %s24, 0
      %p118 = por %p116, %p117
      %p119 = scmp.ne.s32.totalorder %s105, %s106
      %p120 = scmp.eq.s32.totalorder %s25, 1
      %p121 = por %p119, %p120
      %p123 = scmp.ne.s32.totalorder %s106, %s122
      %p124 = scmp.eq.s32.totalorder %s25, 0
      %p125 = por %p123, %p124
      %p126 = scmp.le.s32.totalorder 1, %s19
      %p127 = scmp.lt.s32.totalorder %s19, 3
      %p128 = pnand %p126, %p127
      %p129 = pneg %p128
      // Predicated region
      $region9: #{tpu_custom_call.1} parent=5 // pred_check
        _
      $region10: #{tpu_custom_call.1} parent=5 // pred_check_branch
        %131 = sbr.rel (%p128) target = $region12
      $region11: #{tpu_custom_call.1} parent=5 // pred_region
        %s132 = ssub.s32 %s19, 1
        // Predicated region
        $region13: #{tpu_custom_call.1} parent=11 // pred_check
          %p133 = pneg %p40
        $region14: #{tpu_custom_call.1} parent=11 // pred_check_branch
          %135 = sbr.rel (%p133) target = $region16
        $region15: #{tpu_custom_call.1} parent=11 // pred_region
          %s137 = ssub.s32 16, 16
          %138 = vsyncadd [#allocation5], %s137
          %141 = dma.hbm_to_smem %s0, 16, [#allocation2], [#allocation5]
        $region16: #{tpu_custom_call.1} parent=11 // pred_fallthru
          _
      $region12: #{tpu_custom_call.1} parent=5 // pred_fallthru
        _
      %p142 = scmp.lt.s32.totalorder %s19, 2
      // Predicated region
      $region17: #{tpu_custom_call.1} parent=5 // pred_check
        %p143 = pneg %p142
      $region18: #{tpu_custom_call.1} parent=5 // pred_check_branch
        %145 = sbr.rel (%p143) target = $region20
      $region19: #{tpu_custom_call.1} parent=5 // pred_region
        // Predicated region
        $region21: #{tpu_custom_call.1} parent=19 // pred_check
          %p146 = pneg %p60
        $region22: #{tpu_custom_call.1} parent=19 // pred_check_branch
          %148 = sbr.rel (%p146) target = $region24
        $region23: #{tpu_custom_call.1} parent=19 // pred_region
          %s149 = sand.u32 %s50, 1
          %s150 = scalar_lea.sflag [#allocation3], %s149
          %s151 = sand.u32 %s50, 1
          %s152 = smul.addr %s151, 8
          %s153 = scalar_lea.vmem [#allocation6], %s152
          %s155 = ssub.s32 128, 128
          %156 = vsyncadd %s150, %s155
          %s157 = smul.addr %s19, 128
          %s158 = scalar_lea.hbm %s1, %s157
          %s160 = sshll.u32 %s153, 4
          %s161 = int_to_ptr.vmem [resolvable:$true] %s160
          %163 = dma.hbm_to_vmem [thread:$0]  %s158, 128, %s161, %s150
        $region24: #{tpu_custom_call.1} parent=19 // pred_fallthru
          _
        // Predicated region
        $region25: #{tpu_custom_call.1} parent=19 // pred_check
          %p164 = pneg %p86
        $region26: #{tpu_custom_call.1} parent=19 // pred_check_branch
          %166 = sbr.rel (%p164) target = $region28
        $region27: #{tpu_custom_call.1} parent=19 // pred_region
          %s167 = sand.u32 %s76, 1
          %s168 = scalar_lea.sflag [#allocation8], %s167
          %s169 = sand.u32 %s76, 1
          %s170 = smul.addr %s169, 8
          %s171 = scalar_lea.vmem [#allocation7], %s170
          %s173 = ssub.s32 128, 128
          %174 = vsyncadd %s168, %s173
          %s175 = smul.addr %s19, 128
          %s176 = scalar_lea.hbm %s2, %s175
          %s178 = sshll.u32 %s171, 4
          %s179 = int_to_ptr.vmem [resolvable:$true] %s178
          %181 = dma.hbm_to_vmem [thread:$0]  %s176, 128, %s179, %s168
        $region28: #{tpu_custom_call.1} parent=19 // pred_fallthru
          _
      $region20: #{tpu_custom_call.1} parent=5 // pred_fallthru
        _
      %p182 = scmp.le.s32.totalorder 1, %s19
      %p183 = scmp.lt.s32.totalorder %s19, 3
      %p184 = pnand %p182, %p183
      %p185 = pneg %p184
      // Predicated region
      $region29: #{tpu_custom_call.1} parent=5 // pred_check
        _
      $region30: #{tpu_custom_call.1} parent=5 // pred_check_branch
        %187 = sbr.rel (%p184) target = $region32
      $region31: #{tpu_custom_call.1} parent=5 // pred_region
        %s188 = ssub.s32 %s19, 1
        // Predicated region
        $region33: #{tpu_custom_call.1} parent=31 // pred_check
          %p189 = pneg %p40
        $region34: #{tpu_custom_call.1} parent=31 // pred_check_branch
          %191 = sbr.rel (%p189) target = $region36
        $region35: #{tpu_custom_call.1} parent=31 // pred_region
          %192 = dma.done [#allocation5], 16
        $region36: #{tpu_custom_call.1} parent=31 // pred_fallthru
          _
        %s193 = sand.u32 %s53, 1
        %s194 = scalar_lea.sflag [#allocation3], %s193
        %s195 = sand.u32 %s53, 1
        %s196 = smul.addr %s195, 8
        %s197 = scalar_lea.vmem [#allocation6], %s196
        // Predicated region
        $region37: #{tpu_custom_call.1} parent=31 // pred_check
          %p198 = pneg %p66
        $region38: #{tpu_custom_call.1} parent=31 // pred_check_branch
          %200 = sbr.rel (%p198) target = $region40
        $region39: #{tpu_custom_call.1} parent=31 // pred_region
          %201 = dma.done %s194, 128
        $region40: #{tpu_custom_call.1} parent=31 // pred_fallthru
          _
        %s202 = sand.u32 %s79, 1
        %s203 = scalar_lea.sflag [#allocation8], %s202
        %s204 = sand.u32 %s79, 1
        %s205 = smul.addr %s204, 8
        %s206 = scalar_lea.vmem [#allocation7], %s205
        // Predicated region
        $region41: #{tpu_custom_call.1} parent=31 // pred_check
          %p207 = pneg %p92
        $region42: #{tpu_custom_call.1} parent=31 // pred_check_branch
          %209 = sbr.rel (%p207) target = $region44
        $region43: #{tpu_custom_call.1} parent=31 // pred_region
          %210 = dma.done %s203, 128
        $region44: #{tpu_custom_call.1} parent=31 // pred_fallthru
          _
        %211 = sfence
        %p212 = pneg %p40
        %p213 = pneg %p37
        %s214 = sand.u32 %s53, 1
        %s215 = scalar_lea.sflag [#allocation3], %s214
        %s216 = sand.u32 %s53, 1
        %s217 = smul.addr %s216, 8
        %s218 = scalar_lea.vmem [#allocation6], %s217
        %p219 = pneg %p66
        %p220 = pneg %p63
        %s221 = sand.u32 %s79, 1
        %s222 = scalar_lea.sflag [#allocation8], %s221
        %s223 = sand.u32 %s79, 1
        %s224 = smul.addr %s223, 8
        %s225 = scalar_lea.vmem [#allocation7], %s224
        %p226 = pneg %p92
        %p227 = pneg %p89
        %p228 = pneg %p118
        %p229 = pneg %p115
        %s230 = sand.u32 %s105, 1
        %s231 = scalar_lea.sflag [#allocation4], %s230
        %s232 = sand.u32 %s105, 1
        %s233 = smul.addr %s232, 8
        %s234 = scalar_lea.vmem [#allocation9], %s233
        %s235 = sld [smem:[#allocation2]]
        %s236 = sld [smem:[#allocation2 + $0x1]]
        %s237 = sld [smem:[#allocation2 + $0x2]]
        %s238 = sld [smem:[#allocation2 + $0x3]]
        %s239 = sld [smem:[#allocation2 + $0x4]]
        %s240 = sld [smem:[#allocation2 + $0x5]]
        %s241 = sld [smem:[#allocation2 + $0x6]]
        %s242 = sld [smem:[#allocation2 + $0x7]]
        %s243 = sld [smem:[#allocation2 + $0x8]]
        %v244 = vld [vmem:[%s197] sm:$0xff]
        %v245 = vld [vmem:[%s206] sm:$0xff]
        %v246 = vstv %s235
        %v247 = vmul.f32 %v244, %v246
        %v248 = vstv %s236
        %v249 = vmul.f32 %v245, %v248
        %v250 = vadd.f32 %v247, %v249
        %v251 = vstv %s239
        %v252 = vadd.f32 %v250, %v251
        %v253 = vmax.f32 %v252, 0.0
        %v254 = vstv %s237
        %v255 = vmul.f32 %v244, %v254
        %v256 = vstv %s238
        %v257 = vmul.f32 %v245, %v256
        %v258 = vadd.f32 %v255, %v257
        %v259 = vstv %s240
        %v260 = vadd.f32 %v258, %v259
        %v261 = vmax.f32 %v260, 0.0
        %v262 = vstv %s241
        %v263 = vmul.f32 %v253, %v262
        %v264 = vstv %s242
        %v265 = vmul.f32 %v261, %v264
        %v266 = vadd.f32 %v263, %v265
        %v267 = vstv %s243
        %v268 = vadd.f32 %v266, %v267
        %v269 = vtanh.pop %v268
        %270 = vst [vmem:[%s234] sm:$0xff] %v269
        %s271 = sand.u32 %s105, 1
        %s272 = scalar_lea.sflag [#allocation4], %s271
        %s273 = sand.u32 %s105, 1
        %s274 = smul.addr %s273, 8
        %s275 = scalar_lea.vmem [#allocation9], %s274
        // Predicated region
        $region45: #{tpu_custom_call.1} parent=31 // pred_check
          %p276 = pneg %p115
        $region46: #{tpu_custom_call.1} parent=31 // pred_check_branch
          %278 = sbr.rel (%p276) target = $region48
        $region47: #{tpu_custom_call.1} parent=31 // pred_region
          %s280 = ssub.s32 128, 128
          %281 = vsyncadd %s272, %s280
          %s282 = smul.addr %s24, 128
          %s283 = scalar_lea.hbm %s3, %s282
          %s285 = sshll.u32 %s275, 4
          %s286 = int_to_ptr.vmem [resolvable:$true] %s285
          %288 = dma.vmem_to_hbm [thread:$0]  %s286, 128, %s283, %s272
        $region48: #{tpu_custom_call.1} parent=31 // pred_fallthru
          _
      $region32: #{tpu_custom_call.1} parent=5 // pred_fallthru
        _
      %p289 = scmp.le.s32.totalorder 2, %s19
      // Predicated region
      $region49: #{tpu_custom_call.1} parent=5 // pred_check
        %p290 = pneg %p289
      $region50: #{tpu_custom_call.1} parent=5 // pred_check_branch
        %292 = sbr.rel (%p290) target = $region52
      $region51: #{tpu_custom_call.1} parent=5 // pred_region
        %s293 = ssub.s32 %s19, 2
        // Predicated region
        $region53: #{tpu_custom_call.1} parent=51 // pred_check
          %p294 = pneg %p121
        $region54: #{tpu_custom_call.1} parent=51 // pred_check_branch
          %296 = sbr.rel (%p294) target = $region56
        $region55: #{tpu_custom_call.1} parent=51 // pred_region
          %s297 = sand.u32 %s106, 1
          %s298 = scalar_lea.sflag [#allocation4], %s297
          %s299 = sand.u32 %s106, 1
          %s300 = smul.addr %s299, 8
          %s301 = scalar_lea.vmem [#allocation9], %s300
          %302 = dma.done %s298, 128
        $region56: #{tpu_custom_call.1} parent=51 // pred_fallthru
          _
      $region52: #{tpu_custom_call.1} parent=5 // pred_fallthru
        _
    $region6: #{tpu_custom_call.1} parent=1 // loop_footer
      %s23 = sadd.s32 1, %s19
    $region7: #{tpu_custom_call.1} parent=1 // loop_footer_branch
      %18 = sbr.rel target = $region3
    $region8: #{tpu_custom_call.1} parent=1 // loop_exit
      _
    %303 = vsyncpa [#allocation3], 1
    %s304 = scalar_lea.sflag [#allocation3], 1
    %305 = vsyncpa %s304, 1
    %306 = vsyncpa [#allocation8], 1
    %s307 = scalar_lea.sflag [#allocation8], 1
    %308 = vsyncpa %s307, 1
    %309 = vsyncpa [#allocation4], 1
    %s310 = scalar_lea.sflag [#allocation4], 1
    %311 = vsyncpa %s310, 1
    %312 = vsyncpa [#allocation5], 1
    %s313 = scalar_lea.sflag [#allocation5], 1
    %314 = vsyncpa %s313, 1

</llo_original>
